<compile_context>
chip_gen: v5e
topology: v5e:2x2
jax: 0.10.0
libtpu: 0.0.40
codegen_flags: <defaults>
</compile_context>

<pallas_src>
import functools
import math

import jax
import jax.numpy as jnp
from jax.experimental import pallas as pl
from jax.experimental.pallas import tpu as pltpu


# ---------------------------------------------------------------------------
# Linear kernels: y = x @ W + b   (W stored as (in, out) == PyTorch W.T)
# ---------------------------------------------------------------------------
def _linear_bias_kernel(x_ref, w_ref, b_ref, o_ref):
    acc = jnp.dot(x_ref[...], w_ref[...], preferred_element_type=jnp.float32)
    acc = acc + b_ref[...].astype(jnp.float32)
    o_ref[...] = acc.astype(o_ref.dtype)


def _linear_nobias_kernel(x_ref, w_ref, o_ref):
    acc = jnp.dot(x_ref[...], w_ref[...], preferred_element_type=jnp.float32)
    o_ref[...] = acc.astype(o_ref.dtype)


def linear(x2, w, b=None, *, tile_r=256, tile_n=512):
    """x2: (R, K), w: (K, N), b: (N,) or None -> (R, N)."""
    R, K = x2.shape
    Kw, N = w.shape
    assert K == Kw

    tr = R if R <= tile_r else tile_r      # 256 (mult of 8) or full dim
    tn = N if N <= tile_n else tile_n      # 512 (mult of 128) or full dim
    grid = (pl.cdiv(R, tr), pl.cdiv(N, tn))

    in_specs = [
        pl.BlockSpec((tr, K), lambda i, j: (i, 0)),
        pl.BlockSpec((K, tn), lambda i, j: (0, j)),
    ]
    args = [x2, w]
    if b is not None:
        in_specs.append(pl.BlockSpec((1, tn), lambda i, j: (0, j)))
        args.append(b.reshape(1, N))
        kernel = _linear_bias_kernel
    else:
        kernel = _linear_nobias_kernel

    return pl.pallas_call(
        kernel,
        out_shape=jax.ShapeDtypeStruct((R, N), x2.dtype),
        grid_spec=pltpu.PrefetchScalarGridSpec(
            num_scalar_prefetch=0,
            grid=grid,
            in_specs=in_specs,
            out_specs=pl.BlockSpec((tr, tn), lambda i, j: (i, j)),
        ),
        compiler_params=pltpu.CompilerParams(
            dimension_semantics=("parallel", "parallel"),
            vmem_limit_bytes=64 << 20,
        ),
    )(*args)


# ---------------------------------------------------------------------------
# Flash-style causal attention over (B*nh, T, hd)
# ---------------------------------------------------------------------------
_NEG_INF = -1e30


def _flash_causal_kernel(q_ref, k_ref, v_ref, o_ref, m_sc, l_sc, acc_sc,
                         *, scale, tq, tk):
    qi = pl.program_id(1)
    ki = pl.program_id(2)

    @pl.when(ki == 0)
    def _init():
        m_sc[...] = jnp.full_like(m_sc, _NEG_INF)
        l_sc[...] = jnp.zeros_like(l_sc)
        acc_sc[...] = jnp.zeros_like(acc_sc)

    # Skip kv blocks entirely above the causal diagonal.
    @pl.when(ki * tk <= qi * tq + (tq - 1))
    def _compute():
        q = q_ref[...].astype(jnp.float32)      # (tq, hd)
        k = k_ref[...].astype(jnp.float32)      # (tk, hd)
        v = v_ref[...].astype(jnp.float32)      # (tk, hd)

        s = jnp.dot(q, k.T, preferred_element_type=jnp.float32) * scale  # (tq, tk)

        row = qi * tq + jax.lax.broadcasted_iota(jnp.int32, (tq, tk), 0)
        col = ki * tk + jax.lax.broadcasted_iota(jnp.int32, (tq, tk), 1)
        s = jnp.where(row >= col, s, _NEG_INF)

        m_prev = m_sc[...]
        m_new = jnp.maximum(m_prev, s.max(axis=-1, keepdims=True))
        alpha = jnp.exp(m_prev - m_new)
        p = jnp.exp(s - m_new)

        l_sc[...] = alpha * l_sc[...] + p.sum(axis=-1, keepdims=True)
        acc_sc[...] = alpha * acc_sc[...] + jnp.dot(
            p, v, preferred_element_type=jnp.float32)
        m_sc[...] = m_new

    @pl.when(ki == pl.num_programs(2) - 1)
    def _finalize():
        o_ref[...] = (acc_sc[...] / l_sc[...]).astype(o_ref.dtype)


def causal_attention(q, k, v, *, tile_q=128, tile_k=128):
    """q, k, v: (BH, T, hd) -> (BH, T, hd). Causal, scale = 1/sqrt(hd)."""
    BH, T, hd = q.shape
    scale = 1.0 / math.sqrt(hd)

    tq = T if T <= tile_q else tile_q
    tk = T if T <= tile_k else tile_k
    grid = (BH, pl.cdiv(T, tq), pl.cdiv(T, tk))

    kernel = functools.partial(_flash_causal_kernel, scale=scale, tq=tq, tk=tk)

    return pl.pallas_call(
        kernel,
        out_shape=jax.ShapeDtypeStruct((BH, T, hd), q.dtype),
        grid_spec=pltpu.PrefetchScalarGridSpec(
            num_scalar_prefetch=0,
            grid=grid,
            in_specs=[
                pl.BlockSpec((None, tq, hd), lambda b, qi, ki: (b, qi, 0)),
                pl.BlockSpec((None, tk, hd), lambda b, qi, ki: (b, ki, 0)),
                pl.BlockSpec((None, tk, hd), lambda b, qi, ki: (b, ki, 0)),
            ],
            out_specs=pl.BlockSpec((None, tq, hd), lambda b, qi, ki: (b, qi, 0)),
            scratch_shapes=[
                pltpu.VMEM((tq, 1), jnp.float32),   # running max
                pltpu.VMEM((tq, 1), jnp.float32),   # running denom
                pltpu.VMEM((tq, hd), jnp.float32),  # running numerator
            ],
        ),
        compiler_params=pltpu.CompilerParams(
            dimension_semantics=("parallel", "parallel", "arbitrary"),
            vmem_limit_bytes=64 << 20,
        ),
    )(q, k, v)


# ---------------------------------------------------------------------------
# Full module forward
# ---------------------------------------------------------------------------
def causal_self_attention(x, w_attn, b_attn, w_proj, b_proj, n_head):
    """x: (B, T, C); weights stored as (in, out)."""
    B, T, C = x.shape
    hd = C // n_head

    x2 = x.reshape(B * T, C)
    qkv = linear(x2, w_attn, b_attn).reshape(B, T, 3 * C)
    q, k, v = jnp.split(qkv, 3, axis=-1)                       # (B, T, C) each

    def to_heads(t):
        return (t.reshape(B, T, n_head, hd)
                 .transpose(0, 2, 1, 3)
                 .reshape(B * n_head, T, hd))

    yh = causal_attention(to_heads(q), to_heads(k), to_heads(v))  # (B*nh, T, hd)

    y = (yh.reshape(B, n_head, T, hd)
            .transpose(0, 2, 1, 3)
            .reshape(B * T, C))

    out = linear(y, w_proj, b_proj)
    # resid_dropout with p = 0.0 (eval) is identity.
    return out.reshape(B, T, C)


if __name__ == "__main__":
    B, T, C, n_head = 2, 8, 32, 4
    hd = C // n_head

    key = jax.random.PRNGKey(0)
    kx, kw1, kb1, kw2, kb2 = jax.random.split(key, 5)

    x = jax.random.normal(kx, (B, T, C), dtype=jnp.float32)
    w_attn = jax.random.normal(kw1, (C, 3 * C), dtype=jnp.float32) / math.sqrt(C)
    b_attn = jax.random.normal(kb1, (3 * C,), dtype=jnp.float32) * 0.1
    w_proj = jax.random.normal(kw2, (C, C), dtype=jnp.float32) / math.sqrt(C)
    b_proj = jax.random.normal(kb2, (C,), dtype=jnp.float32) * 0.1

    y = causal_self_attention(x, w_attn, b_attn, w_proj, b_proj, n_head)
    y = jax.block_until_ready(y)

    # -------- pure-JAX reference (matches the PyTorch forward, dropout=0) ----
    qkv = x.reshape(B * T, C) @ w_attn + b_attn
    qr, kr, vr = jnp.split(qkv.reshape(B, T, 3 * C), 3, axis=-1)
    qr = qr.reshape(B, T, n_head, hd).transpose(0, 2, 1, 3)
    kr = kr.reshape(B, T, n_head, hd).transpose(0, 2, 1, 3)
    vr = vr.reshape(B, T, n_head, hd).transpose(0, 2, 1, 3)
    att = jnp.einsum("bhqd,bhkd->bhqk", qr, kr) / math.sqrt(hd)
    causal = jnp.tril(jnp.ones((T, T), dtype=bool))
    att = jnp.where(causal[None, None], att, -jnp.inf)
    att = jax.nn.softmax(att, axis=-1)
    yr = jnp.einsum("bhqk,bhkd->bhqd", att, vr)
    yr = yr.transpose(0, 2, 1, 3).reshape(B * T, C) @ w_proj + b_proj
    y_ref = yr.reshape(B, T, C)

    err = float(jnp.max(jnp.abs(y - y_ref)))
    assert jnp.allclose(y, y_ref, atol=1e-4, rtol=1e-4), f"max abs err = {err}"

    print("KERNEL_OK")
</pallas_src>

<mosaic_0001>
module attributes {stable_mosaic.version = 11 : i64} {
  func.func @_linear_bias_kernel(%arg0: i32, %arg1: i32, %arg2: memref<16x32xf32, #tpu.memory_space<vmem>>, %arg3: memref<32x96xf32, #tpu.memory_space<vmem>>, %arg4: memref<1x96xf32, #tpu.memory_space<vmem>>, %arg5: memref<16x96xf32, #tpu.memory_space<vmem>>) attributes {dimension_semantics = [#tpu.dimension_semantics<parallel>, #tpu.dimension_semantics<parallel>], iteration_bounds = array<i64: 1, 1>, scalar_prefetch = 0 : i64, scratch_operands = 0 : i64, tpu.core_type = #tpu.core_type<tc>, window_params = [{transform_indices = @transform_0, window_bounds = array<i64: 16, 32>}, {transform_indices = @transform_1, window_bounds = array<i64: 32, 96>}, {transform_indices = @transform_2, window_bounds = array<i64: 1, 96>}, {transform_indices = @transform_3, window_bounds = array<i64: 16, 96>}]} {
    %c0 = arith.constant 0 : index
    %c0_0 = arith.constant 0 : index
    %0 = vector.load %arg2[%c0, %c0_0] : memref<16x32xf32, #tpu.memory_space<vmem>>, vector<16x32xf32>
    %c0_1 = arith.constant 0 : index
    %c0_2 = arith.constant 0 : index
    %1 = vector.load %arg3[%c0_1, %c0_2] : memref<32x96xf32, #tpu.memory_space<vmem>>, vector<32x96xf32>
    %cst = arith.constant dense<0.000000e+00> : vector<16x96xf32>
    %2 = tpu.matmul %0, %1, %cst {dimension_numbers = #tpu.dot_dimension_numbers<[1], [0], [0], [1], [0, 0, 1, 1], [], []>} : vector<16x32xf32>, vector<32x96xf32>, vector<16x96xf32> -> vector<16x96xf32>
    %c0_3 = arith.constant 0 : index
    %c0_4 = arith.constant 0 : index
    %3 = vector.load %arg4[%c0_3, %c0_4] : memref<1x96xf32, #tpu.memory_space<vmem>>, vector<1x96xf32>
    %4 = vector.broadcast %3 : vector<1x96xf32> to vector<16x96xf32>
    %5 = arith.addf %2, %4 : vector<16x96xf32>
    %c0_5 = arith.constant 0 : index
    %c0_6 = arith.constant 0 : index
    %6 = vector.load %arg5[%c0_5, %c0_6] : memref<16x96xf32, #tpu.memory_space<vmem>>, vector<16x96xf32>
    tpu.vector_store %arg5[%c0_5, %c0_6], %5 {strides = array<i32>} : memref<16x96xf32, #tpu.memory_space<vmem>>, vector<16x96xf32>,
    return
  }
  func.func @transform_0(%arg0: i32, %arg1: i32) -> (i32, i32) {
    %c0_i32 = arith.constant 0 : i32
    %c0_i32_0 = arith.constant 0 : i32
    return %arg0, %c0_i32 : i32, i32
  }
  func.func @transform_1(%arg0: i32, %arg1: i32) -> (i32, i32) {
    %c0_i32 = arith.constant 0 : i32
    %c0_i32_0 = arith.constant 0 : i32
    return %c0_i32, %arg1 : i32, i32
  }
  func.func @transform_2(%arg0: i32, %arg1: i32) -> (i32, i32) {
    %c0_i32 = arith.constant 0 : i32
    %c0_i32_0 = arith.constant 0 : i32
    return %c0_i32, %arg1 : i32, i32
  }
  func.func @transform_3(%arg0: i32, %arg1: i32) -> (i32, i32) {
    %c0_i32 = arith.constant 0 : i32
    return %arg0, %arg1 : i32, i32
  }
}

</mosaic_0001>

<llo_original>
// kernel: tpu_custom_call.1
$region0: #{tpu_custom_call.1}
  #allocation0 [shape = 'u32[]', space=smem, size = 0x4, offset = 0x4, fixed_abs, tag = 'smem constant byte address 0x4 - core index']
  #allocation1 [shape = 'u32[72,128]{1,0:T(1,128)}', space=vmem, size = 0x9000, scoped, tag = 'internal scratch']
  %s0 = inlined_call_operand.hbm [shape: f32[16,32], index: 0, kind: input, shape index: {}]
  %s1 = inlined_call_operand.hbm [shape: f32[32,96], index: 1, kind: input, shape index: {}]
  %s2 = inlined_call_operand.vmem [shape: f32[1,96], index: 2, kind: input, shape index: {}]
  %s3 = inlined_call_operand.hbm [shape: f32[16,96], index: 3, kind: output, shape index: {}]
  %s4 = sld [smem:[#allocation0]]
  $region30: #{tpu_custom_call.1} parent=0
    _
  %s6 = ssub.s32 1, %s4
  %s7 = scalar_select 0, %s6, %s4
  $region1: #{tpu_custom_call.1} parent=0
    #allocation2 [shape = 'u8[8192]{0}', space=vmem, size = 0x2000, scoped, tag = 'input window, operand 0, single buffered']
    #allocation3 [shape = 's32[1]{0}', space=sflag, size = 0x4, scoped, tag = 'scoped memory for tpu_custom_call.1']
    #allocation4 [shape = 's32[1]{0}', space=sflag, size = 0x4, scoped, tag = 'scoped memory for tpu_custom_call.1']
    #allocation5 [shape = 'u8[16384]{0}', space=vmem, size = 0x4000, scoped, tag = 'input window, operand 1, single buffered']
    #allocation6 [shape = 's32[1]{0}', space=sflag, size = 0x4, scoped, tag = 'scoped memory for tpu_custom_call.1']
    #allocation7 [shape = 'u8[8192]{0}', space=vmem, size = 0x2000, scoped, tag = 'output window, operand 0, single buffered']
    %8 = vsyncpa [#allocation3], 0
    %9 = vsyncpa [#allocation6], 0
    %10 = vsyncpa [#allocation4], 0
    // Predicated region
    $region2: #{tpu_custom_call.1} parent=1 // pred_check
      _
    $region3: #{tpu_custom_call.1} parent=1 // pred_check_branch
      %12 = sbr.rel (0) target = $region5
    $region4: #{tpu_custom_call.1} parent=1 // pred_region
      %14 = vsyncadd [#allocation3], 0
      %s15 = sshll.u32 %s0, 4
      %s16 = int_to_ptr.hbm [resolvable:$true] %s15
      %s17 = sshll.u32 [#allocation2], 4
      %s18 = int_to_ptr.vmem [resolvable:$true] %s17
      %23 = dma.hbm_to_vmem [thread:$0]  %s16, 256, %s18, [#allocation3], 128, 128, 8
    $region5: #{tpu_custom_call.1} parent=1 // pred_fallthru
      _
    // Predicated region
    $region6: #{tpu_custom_call.1} parent=1 // pred_check
      _
    $region7: #{tpu_custom_call.1} parent=1 // pred_check_branch
      %25 = sbr.rel (0) target = $region9
    $region8: #{tpu_custom_call.1} parent=1 // pred_region
      %27 = vsyncadd [#allocation6], 0
      %s28 = sshll.u32 %s1, 4
      %s29 = int_to_ptr.hbm [resolvable:$true] %s28
      %s30 = sshll.u32 [#allocation5], 4
      %s31 = int_to_ptr.vmem [resolvable:$true] %s30
      %36 = dma.hbm_to_vmem [thread:$0]  %s29, 512, %s31, [#allocation6], 128, 128, 8
    $region9: #{tpu_custom_call.1} parent=1 // pred_fallthru
      _
    // Predicated region
    $region10: #{tpu_custom_call.1} parent=1 // pred_check
      _
    $region11: #{tpu_custom_call.1} parent=1 // pred_check_branch
      %38 = sbr.rel (0) target = $region13
    $region12: #{tpu_custom_call.1} parent=1 // pred_region
      _
    $region13: #{tpu_custom_call.1} parent=1 // pred_fallthru
      _
    // Predicated region
    $region14: #{tpu_custom_call.1} parent=1 // pred_check
      _
    $region15: #{tpu_custom_call.1} parent=1 // pred_check_branch
      %40 = sbr.rel (0) target = $region17
    $region16: #{tpu_custom_call.1} parent=1 // pred_region
      %42 = dma.done [#allocation3], 256
    $region17: #{tpu_custom_call.1} parent=1 // pred_fallthru
      _
    // Predicated region
    $region18: #{tpu_custom_call.1} parent=1 // pred_check
      _
    $region19: #{tpu_custom_call.1} parent=1 // pred_check_branch
      %44 = sbr.rel (0) target = $region21
    $region20: #{tpu_custom_call.1} parent=1 // pred_region
      %46 = dma.done [#allocation6], 512
    $region21: #{tpu_custom_call.1} parent=1 // pred_fallthru
      _
    %v47 = vld [vmem:[#allocation2] sm:$0xff]
    %v48 = vld [vmem:[#allocation2 + $0x8] sm:$0xff]
    %v49 = vld [vmem:[#allocation5] sm:$0xff]
    %v50 = vld [vmem:[#allocation5 + $0x8] sm:$0xff]
    %v51 = vld [vmem:[#allocation5 + $0x10] sm:$0xff]
    %v52 = vld [vmem:[#allocation5 + $0x18] sm:$0xff]
    %v53 = vld [vmem:[%s2] sm:$0x1]
    %v55 = vperm.slane %v53, 0
    %vm57 = vcmask 261120
    %v59 = vsel %vm57, %v47, 0
    %v62 = vsel %vm57, %v48, 0
    %64 = vmatpush.msra.mxu0 0.0
    %65 = vmatpush.msra.mxu0 0.0
    %66 = vmatpush.msra.mxu0 0.0
    %67 = vmatpush.msra.mxu0 0.0
    %68 = vmatpush.msra.mxu0 0.0
    %69 = vmatpush.msra.mxu0 0.0
    %70 = vmatpush.msra.mxu0 0.0
    %71 = vmatpush.msra.mxu0 0.0
    %72 = vmatpush.msra.mxu0 0.0
    %73 = vmatpush.msra.mxu0 0.0
    %74 = vmatpush.msra.mxu0 0.0
    %75 = vmatpush.msra.mxu0 0.0
    %76 = vmatpush.msra.mxu0 %v52
    %77 = vmatpush.msra.mxu0 %v51
    %78 = vmatpush.msra.mxu0 %v50
    %79 = vmatpush.msra.mxu0 %v49
    %80 = vmatmul.f32.gmra.mxu0 %v59
    %v81 = vpop.f32.mrf.mxu0
    %v82 = vadd.f32 %v55, %v81
    %83 = vmatmul.f32.gmra.mxu0 %v62
    %v84 = vpop.f32.mrf.mxu0
    %v85 = vadd.f32 %v55, %v84
    %86 = vdwg.mxu0
    %vm87 = vcmask 785408
    %88 = vst.msk [vmem:[#allocation7] sm:$0xff] %vm87, %v82
    %89 = vst.msk [vmem:[#allocation7 + $0x8] sm:$0xff] %vm87, %v85
    // Predicated region
    $region22: #{tpu_custom_call.1} parent=1 // pred_check
      _
    $region23: #{tpu_custom_call.1} parent=1 // pred_check_branch
      %91 = sbr.rel (0) target = $region25
    $region24: #{tpu_custom_call.1} parent=1 // pred_region
      %93 = vsyncadd [#allocation4], 0
      %s94 = sshll.u32 [#allocation7], 4
      %s95 = int_to_ptr.vmem [resolvable:$true] %s94
      %s96 = sshll.u32 %s3, 4
      %s97 = int_to_ptr.hbm [resolvable:$true] %s96
      %102 = dma.vmem_to_hbm [thread:$0]  %s95, 256, %s97, [#allocation4], 128, 128, 8
    $region25: #{tpu_custom_call.1} parent=1 // pred_fallthru
      _
    // Predicated region
    $region26: #{tpu_custom_call.1} parent=1 // pred_check
      _
    $region27: #{tpu_custom_call.1} parent=1 // pred_check_branch
      %104 = sbr.rel (0) target = $region29
    $region28: #{tpu_custom_call.1} parent=1 // pred_region
      %106 = dma.done [#allocation4], 256
    $region29: #{tpu_custom_call.1} parent=1 // pred_fallthru
      _
    %107 = vsyncpa [#allocation3], 1
    %108 = vsyncpa [#allocation6], 1
    %109 = vsyncpa [#allocation4], 1

</llo_original>
